<compile_context>
chip_gen: v7x
topology: tpu7x:2x2x1
jax: 0.10.0
libtpu: 0.0.40
codegen_flags: <defaults>
</compile_context>

<pallas_src>
import functools

import jax
import jax.numpy as jnp
from jax.experimental import pallas as pl
from jax.experimental.pallas import tpu as pltpu

_LANE = 128
_SUBLANE = 8


def _round_up(x, m):
    return ((x + m - 1) // m) * m


def _pick_m_tile(m, max_tile=512):
    """Split M into equal-ish 8-aligned tiles <= max_tile (<= 8 pad rows/tile)."""
    num_tiles = -(-m // max_tile)                    # ceil
    tile = _round_up(-(-m // num_tiles), _SUBLANE)   # ceil, then 8-align
    return tile, tile * num_tiles                    # (tile_m, m_padded)


def _gemm_bias_relu_kernel(p_ref, w_ref, b_ref, o_ref):
    """(tile_m, K) x (K, tile_c) GEMM with fused bias + ReLU.

    One MXU contraction per grid step, f32 accumulation; the only non-MXU work
    is the bias add, the ReLU and the output cast/store (all im2col geometry is
    resolved in the wrapper).
    """
    acc = jnp.dot(p_ref[...], w_ref[...], preferred_element_type=jnp.float32)
    acc = acc + b_ref[...].astype(jnp.float32)       # (tile_m, tc) + (1, tc)
    o_ref[...] = jnp.maximum(acc, 0.0).astype(o_ref.dtype)


def conv2d_relu_nhwc(x_nhwc, w_hwio, bias, *, stride=1, dilation=1, padding=0):
    """Conv2d(bias=True) + ReLU on NHWC activations. Returns NHWC output.

    x_nhwc : (N, H, W, Cin)
    w_hwio : (KH, KW, Cin, Cout)
    bias   : (Cout,)
    """
    n, h, w, c_in = x_nhwc.shape
    kh, kw, c_in_w, c_out = w_hwio.shape
    assert c_in == c_in_w

    h_out = (h + 2 * padding - dilation * (kh - 1) - 1) // stride + 1
    w_out = (w + 2 * padding - dilation * (kw - 1) - 1) // stride + 1
    assert h_out > 0 and w_out > 0

    # ---- wrapper-side im2col -------------------------------------------------
    # For the small-Cin layers this module targets, gathering strided/dilated
    # taps inside the kernel is lane-sparse VPU/XLU work that starves the MXU;
    # the patch matrix is built here instead (one fused XLA pass, spatial
    # zero-padding folded in) and the kernel is a pure tiled GEMM.
    # TODO(synk): for large Cin (contraction dim >= ~512) add an in-kernel
    # im2col variant to avoid materializing the KH*KW-times-larger patch array.
    if padding:
        x_sp = jnp.pad(
            x_nhwc, ((0, 0), (padding, padding), (padding, padding), (0, 0)))
    else:
        x_sp = x_nhwc

    taps = []
    for ih in range(kh):
        for iw in range(kw):
            h0, w0 = ih * dilation, iw * dilation
            taps.append(jax.lax.slice(
                x_sp,
                (0, h0, w0, 0),
                (n, h0 + (h_out - 1) * stride + 1,
                 w0 + (w_out - 1) * stride + 1, c_in),
                (1, stride, stride, 1)))             # (N, H_out, W_out, Cin)
    k_dim = kh * kw * c_in
    patches = jnp.concatenate(taps, axis=-1).reshape(n * h_out * w_out, k_dim)

    # ---- tiling ---------------------------------------------------------------
    m = n * h_out * w_out
    tile_m, m_pad = _pick_m_tile(m)
    if m_pad != m:
        patches = jnp.pad(patches, ((0, m_pad - m), (0, 0)))
    grid_m = m_pad // tile_m

    # Cout: lane-pad only when already >= 128; small Cout keeps its true width
    # (full-dim block, masked vst) to avoid inflating output HBM writeback 16x.
    if c_out % _LANE == 0 or c_out < _LANE:
        c_out_p = c_out
    else:
        c_out_p = _round_up(c_out, _LANE)
    if c_out_p % 256 == 0:
        tile_c = 256
    elif c_out_p % _LANE == 0:
        tile_c = _LANE
    else:
        tile_c = c_out_p
    grid_c = c_out_p // tile_c

    # Weights in im2col order [(ih, iw, cin)] x [cout]; bias as a (1, Cout) row.
    w2d = w_hwio.reshape(k_dim, c_out)
    b2d = bias.reshape(1, c_out)
    if c_out_p != c_out:
        w2d = jnp.pad(w2d, ((0, 0), (0, c_out_p - c_out)))
        b2d = jnp.pad(b2d, ((0, 0), (0, c_out_p - c_out)))

    itemsize = jnp.dtype(x_nhwc.dtype).itemsize
    block_bytes = (tile_m * k_dim + k_dim * tile_c + tile_c
                   + tile_m * tile_c) * itemsize
    vmem_limit = int(min(max(4 * block_bytes, 16 * 1024 * 1024),
                         64 * 1024 * 1024))

    cost = pl.CostEstimate(
        flops=2 * m * k_dim * c_out,                 # real Cout, not padded
        transcendentals=0,
        bytes_accessed=(m_pad * k_dim + k_dim * c_out_p + c_out_p
                        + m_pad * c_out_p) * itemsize,
    )

    # TODO(synk): when grid_c == 1 the weight/bias block index is constant;
    # pipeline_mode=pl.Buffered(1) on those specs would drop their second
    # pipeline buffer (omitted here for maximum lowering compatibility).
    # TODO(synk): for very large K add a K grid axis + f32 VMEM accumulator
    # with pl.when init/finalize so weights stream instead of staying resident.
    out_p = pl.pallas_call(
        _gemm_bias_relu_kernel,
        out_shape=jax.ShapeDtypeStruct((m_pad, c_out_p), x_nhwc.dtype),
        grid=(grid_m, grid_c),
        in_specs=[
            # Patch rows: each grid step streams only its own tile_m rows
            # (auto double-buffered), so VMEM stays bounded regardless of
            # activation size and the two v7x cores fetch disjoint rows.
            pl.BlockSpec((tile_m, k_dim), lambda i, j: (i, 0)),
            # Weights / bias: Cout-tiled; constant along the M grid axis.
            pl.BlockSpec((k_dim, tile_c), lambda i, j: (0, j)),
            pl.BlockSpec((1, tile_c), lambda i, j: (0, j)),
        ],
        out_specs=pl.BlockSpec((tile_m, tile_c), lambda i, j: (i, j)),
        compiler_params=pltpu.CompilerParams(
            dimension_semantics=("parallel", "parallel"),
            vmem_limit_bytes=vmem_limit,
        ),
        cost_estimate=cost,
    )(patches, w2d, b2d)

    # Metadata-only reshape (plus a cheap slice when M/Cout were padded).
    return out_p[:m, :c_out].reshape(n, h_out, w_out, c_out)


@functools.partial(jax.jit, static_argnames=("stride", "dilation", "padding"))
def basic_conv2d(x_nchw, weight, bias, *, stride=1, dilation=1, padding=0):
    """PyTorch-parity wrapper: NCHW in / NCHW out, OIHW weights."""
    x_nhwc = jnp.transpose(x_nchw, (0, 2, 3, 1))
    w_hwio = jnp.transpose(weight, (2, 3, 1, 0))     # (KH, KW, Cin, Cout)
    out_nhwc = conv2d_relu_nhwc(x_nhwc, w_hwio, bias, stride=stride,
                                dilation=dilation, padding=padding)
    return jnp.transpose(out_nhwc, (0, 3, 1, 2))


def _reference(x, weight, bias, stride, dilation, padding):
    cout = weight.shape[0]
    ref = jax.lax.conv_general_dilated(
        x, weight, window_strides=(stride, stride),
        padding=((padding, padding), (padding, padding)),
        rhs_dilation=(dilation, dilation),
        dimension_numbers=("NCHW", "OIHW", "NCHW"),
    ) + bias.reshape(1, cout, 1, 1)
    return jnp.maximum(ref, 0.0)


if __name__ == "__main__":
    key = jax.random.PRNGKey(0)

    # Case 1: BasicConv2d(4, 8, kernel_size=3, stride=1, padding=1)
    N, CIN, H, W = 2, 4, 16, 16
    COUT, K = 8, 3
    STRIDE, DILATION, PADDING = 1, 1, 1

    kx, kw_, kb, k2 = jax.random.split(key, 4)
    x = jax.random.normal(kx, (N, CIN, H, W), dtype=jnp.float32)
    fan_in = CIN * K * K
    bound = 1.0 / (fan_in ** 0.5)
    weight = jax.random.uniform(kw_, (COUT, CIN, K, K), jnp.float32, -bound, bound)
    bias = jax.random.uniform(kb, (COUT,), jnp.float32, -bound, bound)

    out = basic_conv2d(x, weight, bias, stride=STRIDE, dilation=DILATION,
                       padding=PADDING)
    jax.block_until_ready(out)
    ref = _reference(x, weight, bias, STRIDE, DILATION, PADDING)
    assert out.shape == (N, COUT, H, W)
    # Loose tolerance: TPU f32 matmuls at default precision use bf16 multiplies;
    # real indexing/ordering bugs would produce O(0.1+) errors.
    assert jnp.allclose(out, ref, atol=1e-2, rtol=1e-2), \
        float(jnp.abs(out - ref).max())

    # Case 2: strided + dilated variant to exercise the general tap geometry.
    N2, CIN2, H2, W2 = 1, 8, 17, 17
    COUT2, K2 = 16, 3
    S2, D2, P2 = 2, 2, 2
    k2x, k2w, k2b = jax.random.split(k2, 3)
    x2 = jax.random.normal(k2x, (N2, CIN2, H2, W2), dtype=jnp.float32)
    bound2 = 1.0 / ((CIN2 * K2 * K2) ** 0.5)
    w2 = jax.random.uniform(k2w, (COUT2, CIN2, K2, K2), jnp.float32, -bound2, bound2)
    b2 = jax.random.uniform(k2b, (COUT2,), jnp.float32, -bound2, bound2)

    out2 = basic_conv2d(x2, w2, b2, stride=S2, dilation=D2, padding=P2)
    jax.block_until_ready(out2)
    ref2 = _reference(x2, w2, b2, S2, D2, P2)
    assert out2.shape == ref2.shape
    assert jnp.allclose(out2, ref2, atol=1e-2, rtol=1e-2), \
        float(jnp.abs(out2 - ref2).max())

    print("KERNEL_OK")
</pallas_src>

<mosaic_0001>
module attributes {stable_mosaic.version = 11 : i64} {
  func.func @_gemm_bias_relu_kernel(%arg0: i32, %arg1: i32, %arg2: memref<512x36xf32, #tpu.memory_space<vmem>>, %arg3: memref<36x8xf32, #tpu.memory_space<vmem>>, %arg4: memref<1x8xf32, #tpu.memory_space<vmem>>, %arg5: memref<512x8xf32, #tpu.memory_space<vmem>>) attributes {dimension_semantics = [#tpu.dimension_semantics<parallel>, #tpu.dimension_semantics<parallel>], iteration_bounds = array<i64: 1, 1>, scalar_prefetch = 0 : i64, scratch_operands = 0 : i64, tpu.core_type = #tpu.core_type<tc>, window_params = [{transform_indices = @transform_0, window_bounds = array<i64: 512, 36>}, {transform_indices = @transform_1, window_bounds = array<i64: 36, 8>}, {transform_indices = @transform_2, window_bounds = array<i64: 1, 8>}, {transform_indices = @transform_3, window_bounds = array<i64: 512, 8>}]} {
    %c0 = arith.constant 0 : index
    %c0_0 = arith.constant 0 : index
    %0 = vector.load %arg2[%c0, %c0_0] : memref<512x36xf32, #tpu.memory_space<vmem>>, vector<512x36xf32>
    %c0_1 = arith.constant 0 : index
    %c0_2 = arith.constant 0 : index
    %1 = vector.load %arg3[%c0_1, %c0_2] : memref<36x8xf32, #tpu.memory_space<vmem>>, vector<36x8xf32>
    %cst = arith.constant dense<0.000000e+00> : vector<512x8xf32>
    %2 = tpu.matmul %0, %1, %cst {dimension_numbers = #tpu.dot_dimension_numbers<[1], [0], [0], [1], [0, 0, 1, 1], [], []>} : vector<512x36xf32>, vector<36x8xf32>, vector<512x8xf32> -> vector<512x8xf32>
    %c0_3 = arith.constant 0 : index
    %c0_4 = arith.constant 0 : index
    %3 = vector.load %arg4[%c0_3, %c0_4] : memref<1x8xf32, #tpu.memory_space<vmem>>, vector<1x8xf32>
    %4 = vector.broadcast %3 : vector<1x8xf32> to vector<512x8xf32>
    %5 = arith.addf %2, %4 : vector<512x8xf32>
    %cst_5 = arith.constant 0.000000e+00 : f32
    %6 = vector.broadcast %cst_5 : f32 to vector<512x8xf32>
    %7 = arith.maximumf %5, %6 : vector<512x8xf32>
    %c0_6 = arith.constant 0 : index
    %c0_7 = arith.constant 0 : index
    %8 = vector.load %arg5[%c0_6, %c0_7] : memref<512x8xf32, #tpu.memory_space<vmem>>, vector<512x8xf32>
    tpu.vector_store %arg5[%c0_6, %c0_7], %7 {strides = array<i32>} : memref<512x8xf32, #tpu.memory_space<vmem>>, vector<512x8xf32>,
    return
  }
  func.func @transform_0(%arg0: i32, %arg1: i32) -> (i32, i32) {
    %c0_i32 = arith.constant 0 : i32
    %c0_i32_0 = arith.constant 0 : i32
    return %arg0, %c0_i32 : i32, i32
  }
  func.func @transform_1(%arg0: i32, %arg1: i32) -> (i32, i32) {
    %c0_i32 = arith.constant 0 : i32
    %c0_i32_0 = arith.constant 0 : i32
    return %c0_i32, %arg1 : i32, i32
  }
  func.func @transform_2(%arg0: i32, %arg1: i32) -> (i32, i32) {
    %c0_i32 = arith.constant 0 : i32
    %c0_i32_0 = arith.constant 0 : i32
    return %c0_i32, %arg1 : i32, i32
  }
  func.func @transform_3(%arg0: i32, %arg1: i32) -> (i32, i32) {
    %c0_i32 = arith.constant 0 : i32
    return %arg0, %arg1 : i32, i32
  }
}

</mosaic_0001>

<llo_original>
// kernel: basic_conv2d.1
$region0: #{basic_conv2d.1}
  #allocation0 [shape = 'u32[]', space=smem, size = 0x4, offset = 0x4, fixed_abs, tag = 'smem constant byte address 0x4 - core index']
  #allocation1 [shape = 'u32[144,128]{1,0:T(1,128)}', space=vmem, size = 0x12000, scoped, tag = 'internal scratch']
  %s0 = inlined_call_operand.vmem [shape: f32[512,36], index: 0, kind: input, shape index: {}]
  %s1 = inlined_call_operand.vmem [shape: f32[36,8], index: 1, kind: input, shape index: {}]
  %s2 = inlined_call_operand.vmem [shape: f32[1,8], index: 2, kind: input, shape index: {}]
  %s3 = inlined_call_operand.vmem [shape: f32[512,8], index: 3, kind: output, shape index: {}]
  %s4 = sld [smem:[#allocation0]]
  $region22: #{basic_conv2d.1} parent=0
    _
  %s6 = ssub.s32 1, %s4
  %s7 = scalar_select 0, %s6, %s4
  // Predicated region
  $region2: #{basic_conv2d.1} parent=0 // pred_check
    _
  $region3: #{basic_conv2d.1} parent=0 // pred_check_branch
    %9 = sbr.rel (0) target = $region5
  $region4: #{basic_conv2d.1} parent=0 // pred_region
    _
  $region5: #{basic_conv2d.1} parent=0 // pred_fallthru
    _
  // Predicated region
  $region6: #{basic_conv2d.1} parent=0 // pred_check
    _
  $region7: #{basic_conv2d.1} parent=0 // pred_check_branch
    %11 = sbr.rel (0) target = $region9
  $region8: #{basic_conv2d.1} parent=0 // pred_region
    _
  $region9: #{basic_conv2d.1} parent=0 // pred_fallthru
    _
  // Predicated region
  $region10: #{basic_conv2d.1} parent=0 // pred_check
    _
  $region11: #{basic_conv2d.1} parent=0 // pred_check_branch
    %13 = sbr.rel (0) target = $region13
  $region12: #{basic_conv2d.1} parent=0 // pred_region
    _
  $region13: #{basic_conv2d.1} parent=0 // pred_fallthru
    _
  %v14 = vld [vmem:[%s0] sm:$0xff]
  %v15 = vld [vmem:[%s0 + $0x8] sm:$0xff]
  %v16 = vld [vmem:[%s0 + $0x10] sm:$0xff]
  %v17 = vld [vmem:[%s0 + $0x18] sm:$0xff]
  %v18 = vld [vmem:[%s0 + $0x20] sm:$0xff]
  %v19 = vld [vmem:[%s0 + $0x28] sm:$0xff]
  %v20 = vld [vmem:[%s0 + $0x30] sm:$0xff]
  %v21 = vld [vmem:[%s0 + $0x38] sm:$0xff]
  %v22 = vld [vmem:[%s0 + $0x40] sm:$0xff]
  %v23 = vld [vmem:[%s0 + $0x48] sm:$0xff]
  %v24 = vld [vmem:[%s0 + $0x50] sm:$0xff]
  %v25 = vld [vmem:[%s0 + $0x58] sm:$0xff]
  %v26 = vld [vmem:[%s0 + $0x60] sm:$0xff]
  %v27 = vld [vmem:[%s0 + $0x68] sm:$0xff]
  %v28 = vld [vmem:[%s0 + $0x70] sm:$0xff]
  %v29 = vld [vmem:[%s0 + $0x78] sm:$0xff]
  %v30 = vld [vmem:[%s0 + $0x80] sm:$0xff]
  %v31 = vld [vmem:[%s0 + $0x88] sm:$0xff]
  %v32 = vld [vmem:[%s0 + $0x90] sm:$0xff]
  %v33 = vld [vmem:[%s0 + $0x98] sm:$0xff]
  %v34 = vld [vmem:[%s0 + $0xa0] sm:$0xff]
  %v35 = vld [vmem:[%s0 + $0xa8] sm:$0xff]
  %v36 = vld [vmem:[%s0 + $0xb0] sm:$0xff]
  %v37 = vld [vmem:[%s0 + $0xb8] sm:$0xff]
  %v38 = vld [vmem:[%s0 + $0xc0] sm:$0xff]
  %v39 = vld [vmem:[%s0 + $0xc8] sm:$0xff]
  %v40 = vld [vmem:[%s0 + $0xd0] sm:$0xff]
  %v41 = vld [vmem:[%s0 + $0xd8] sm:$0xff]
  %v42 = vld [vmem:[%s0 + $0xe0] sm:$0xff]
  %v43 = vld [vmem:[%s0 + $0xe8] sm:$0xff]
  %v44 = vld [vmem:[%s0 + $0xf0] sm:$0xff]
  %v45 = vld [vmem:[%s0 + $0xf8] sm:$0xff]
  %v46 = vld [vmem:[%s0 + $0x100] sm:$0xff]
  %v47 = vld [vmem:[%s0 + $0x108] sm:$0xff]
  %v48 = vld [vmem:[%s0 + $0x110] sm:$0xff]
  %v49 = vld [vmem:[%s0 + $0x118] sm:$0xff]
  %v50 = vld [vmem:[%s0 + $0x120] sm:$0xff]
  %v51 = vld [vmem:[%s0 + $0x128] sm:$0xff]
  %v52 = vld [vmem:[%s0 + $0x130] sm:$0xff]
  %v53 = vld [vmem:[%s0 + $0x138] sm:$0xff]
  %v54 = vld [vmem:[%s0 + $0x140] sm:$0xff]
  %v55 = vld [vmem:[%s0 + $0x148] sm:$0xff]
  %v56 = vld [vmem:[%s0 + $0x150] sm:$0xff]
  %v57 = vld [vmem:[%s0 + $0x158] sm:$0xff]
  %v58 = vld [vmem:[%s0 + $0x160] sm:$0xff]
  %v59 = vld [vmem:[%s0 + $0x168] sm:$0xff]
  %v60 = vld [vmem:[%s0 + $0x170] sm:$0xff]
  %v61 = vld [vmem:[%s0 + $0x178] sm:$0xff]
  %v62 = vld [vmem:[%s0 + $0x180] sm:$0xff]
  %v63 = vld [vmem:[%s0 + $0x188] sm:$0xff]
  %v64 = vld [vmem:[%s0 + $0x190] sm:$0xff]
  %v65 = vld [vmem:[%s0 + $0x198] sm:$0xff]
  %v66 = vld [vmem:[%s0 + $0x1a0] sm:$0xff]
  %v67 = vld [vmem:[%s0 + $0x1a8] sm:$0xff]
  %v68 = vld [vmem:[%s0 + $0x1b0] sm:$0xff]
  %v69 = vld [vmem:[%s0 + $0x1b8] sm:$0xff]
  %v70 = vld [vmem:[%s0 + $0x1c0] sm:$0xff]
  %v71 = vld [vmem:[%s0 + $0x1c8] sm:$0xff]
  %v72 = vld [vmem:[%s0 + $0x1d0] sm:$0xff]
  %v73 = vld [vmem:[%s0 + $0x1d8] sm:$0xff]
  %v74 = vld [vmem:[%s0 + $0x1e0] sm:$0xff]
  %v75 = vld [vmem:[%s0 + $0x1e8] sm:$0xff]
  %v76 = vld [vmem:[%s0 + $0x1f0] sm:$0xff]
  %v77 = vld [vmem:[%s0 + $0x1f8] sm:$0xff]
  %v78 = vld [vmem:[%s1] sm:$0xff]
  %v79 = vld [vmem:[%s1 + $0x8] sm:$0xff]
  %v80 = vld [vmem:[%s1 + $0x10] sm:$0xff]
  %v81 = vld [vmem:[%s1 + $0x18] sm:$0xff]
  %v82 = vld [vmem:[%s1 + $0x20] sm:$0xf]
  %v83 = vld [vmem:[%s2] sm:$0x1]
  %v85 = vlaneseq
  %v86 = vshrl.u32 %v85, 7
  %v87 = vsub.s32 0, %v86
  %v88 = vrot.slane %v83, %v87
  %vm90 = vcmask 293888
  %v92 = vsel %vm90, %v14, 0
  %v95 = vsel %vm90, %v15, 0
  %v98 = vsel %vm90, %v16, 0
  %v101 = vsel %vm90, %v17, 0
  %v104 = vsel %vm90, %v18, 0
  %v107 = vsel %vm90, %v19, 0
  %v110 = vsel %vm90, %v20, 0
  %v113 = vsel %vm90, %v21, 0
  %v116 = vsel %vm90, %v22, 0
  %v119 = vsel %vm90, %v23, 0
  %v122 = vsel %vm90, %v24, 0
  %v125 = vsel %vm90, %v25, 0
  %v128 = vsel %vm90, %v26, 0
  %v131 = vsel %vm90, %v27, 0
  %v134 = vsel %vm90, %v28, 0
  %v137 = vsel %vm90, %v29, 0
  %v140 = vsel %vm90, %v30, 0
  %v143 = vsel %vm90, %v31, 0
  %v146 = vsel %vm90, %v32, 0
  %v149 = vsel %vm90, %v33, 0
  %v152 = vsel %vm90, %v34, 0
  %v155 = vsel %vm90, %v35, 0
  %v158 = vsel %vm90, %v36, 0
  %v161 = vsel %vm90, %v37, 0
  %v164 = vsel %vm90, %v38, 0
  %v167 = vsel %vm90, %v39, 0
  %v170 = vsel %vm90, %v40, 0
  %v173 = vsel %vm90, %v41, 0
  %v176 = vsel %vm90, %v42, 0
  %v179 = vsel %vm90, %v43, 0
  %v182 = vsel %vm90, %v44, 0
  %v185 = vsel %vm90, %v45, 0
  %v188 = vsel %vm90, %v46, 0
  %v191 = vsel %vm90, %v47, 0
  %v194 = vsel %vm90, %v48, 0
  %v197 = vsel %vm90, %v49, 0
  %v200 = vsel %vm90, %v50, 0
  %v203 = vsel %vm90, %v51, 0
  %v206 = vsel %vm90, %v52, 0
  %v209 = vsel %vm90, %v53, 0
  %v212 = vsel %vm90, %v54, 0
  %v215 = vsel %vm90, %v55, 0
  %v218 = vsel %vm90, %v56, 0
  %v221 = vsel %vm90, %v57, 0
  %v224 = vsel %vm90, %v58, 0
  %v227 = vsel %vm90, %v59, 0
  %v230 = vsel %vm90, %v60, 0
  %v233 = vsel %vm90, %v61, 0
  %v236 = vsel %vm90, %v62, 0
  %v239 = vsel %vm90, %v63, 0
  %v242 = vsel %vm90, %v64, 0
  %v245 = vsel %vm90, %v65, 0
  %v248 = vsel %vm90, %v66, 0
  %v251 = vsel %vm90, %v67, 0
  %v254 = vsel %vm90, %v68, 0
  %v257 = vsel %vm90, %v69, 0
  %v260 = vsel %vm90, %v70, 0
  %v263 = vsel %vm90, %v71, 0
  %v266 = vsel %vm90, %v72, 0
  %v269 = vsel %vm90, %v73, 0
  %v272 = vsel %vm90, %v74, 0
  %v275 = vsel %vm90, %v75, 0
  %v278 = vsel %vm90, %v76, 0
  %v281 = vsel %vm90, %v77, 0
  %vm283 = vcmask 1043456
  %v285 = vsel %vm283, %v82, 0
  %287 = vmatprep.subr.mxu0 0.0
  %288 = vmatpush1.msra.mxu0 %v78
  %289 = vmatprep.subr.mxu0 0.0
  %290 = vmatpush1.msra.mxu0 %v79
  %291 = vmatprep.subr.mxu0 0.0
  %292 = vmatpush1.msra.mxu0 %v80
  %293 = vmatprep.subr.mxu0 0.0
  %294 = vmatpush1.msra.mxu0 %v81
  %295 = vmatprep.subr.mxu0 0.0
  %296 = vmatpush1.msra.mxu0 %v285
  %297 = vmatprep.subr.mxu0 0.0
  %298 = vmatpush1.msra.mxu0 0.0
  %299 = vmatprep.subr.mxu0 0.0
  %300 = vmatpush1.msra.mxu0 0.0
  %301 = vmatprep.subr.mxu0 0.0
  %302 = vmatpush1.msra.mxu0 0.0
  %303 = vmatprep.subr.mxu0 0.0
  %304 = vmatpush1.msra.mxu0 0.0
  %305 = vmatprep.subr.mxu0 0.0
  %306 = vmatpush1.msra.mxu0 0.0
  %307 = vmatprep.subr.mxu0 0.0
  %308 = vmatpush1.msra.mxu0 0.0
  %309 = vmatprep.subr.mxu0 0.0
  %310 = vmatpush1.msra.mxu0 0.0
  %311 = vmatprep.subr.mxu0 0.0
  %312 = vmatpush1.msra.mxu0 0.0
  %313 = vmatprep.subr.mxu0 0.0
  %314 = vmatpush1.msra.mxu0 0.0
  %315 = vmatprep.subr.mxu0 0.0
  %316 = vmatpush1.msra.mxu0 0.0
  %317 = vmatprep.subr.mxu0 0.0
  %318 = vmatpush1.msra.mxu0 0.0
  %319 = vmatprep.subr.mxu0 0.0
  %320 = vmatpush1.msra.mxu0 0.0
  %321 = vmatprep.subr.mxu0 0.0
  %322 = vmatpush1.msra.mxu0 0.0
  %323 = vmatprep.subr.mxu0 0.0
  %324 = vmatpush1.msra.mxu0 0.0
  %325 = vmatprep.subr.mxu0 0.0
  %326 = vmatpush1.msra.mxu0 0.0
  %327 = vmatprep.subr.mxu0 0.0
  %328 = vmatpush1.msra.mxu0 0.0
  %329 = vmatprep.subr.mxu0 0.0
  %330 = vmatpush1.msra.mxu0 0.0
  %331 = vmatprep.subr.mxu0 0.0
  %332 = vmatpush1.msra.mxu0 0.0
  %333 = vmatprep.subr.mxu0 0.0
  %334 = vmatpush1.msra.mxu0 0.0
  %335 = vmatprep.subr.mxu0 0.0
  %336 = vmatpush1.msra.mxu0 0.0
  %337 = vmatprep.subr.mxu0 0.0
  %338 = vmatpush1.msra.mxu0 0.0
  %339 = vmatprep.subr.mxu0 0.0
  %340 = vmatpush1.msra.mxu0 0.0
  %341 = vmatprep.subr.mxu0 0.0
  %342 = vmatpush1.msra.mxu0 0.0
  %343 = vmatprep.subr.mxu0 0.0
  %344 = vmatpush1.msra.mxu0 0.0
  %345 = vmatprep.subr.mxu0 0.0
  %346 = vmatpush1.msra.mxu0 0.0
  %347 = vmatprep.subr.mxu0 0.0
  %348 = vmatpush1.msra.mxu0 0.0
  %349 = vmatprep.subr.mxu0 0.0
  %350 = vmatpush1.msra.mxu0 0.0
  %351 = vmatprep.mubr.f32.mxu0 0.0
  %352 = vmatmul.mubr.f32.gmra.mrb[0].mxu0 %v92
  %v353 = vpop.f32.mrb[0].mxu0
  %v354 = vadd.f32 %v88, %v353
  %v355 = vpop.f32.mrb[0].mxu0
  %356 = vmatprep.mubr.f32.mxu0 0.0
  %357 = vmatmul.mubr.f32.gmra.mrb[0].mxu0 %v95
  %v358 = vpop.f32.mrb[0].mxu0
  %v359 = vadd.f32 %v88, %v358
  %v360 = vpop.f32.mrb[0].mxu0
  %361 = vmatprep.mubr.f32.mxu0 0.0
  %362 = vmatmul.mubr.f32.gmra.mrb[0].mxu0 %v98
  %v363 = vpop.f32.mrb[0].mxu0
  %v364 = vadd.f32 %v88, %v363
  %v365 = vpop.f32.mrb[0].mxu0
  %366 = vmatprep.mubr.f32.mxu0 0.0
  %367 = vmatmul.mubr.f32.gmra.mrb[0].mxu0 %v101
  %v368 = vpop.f32.mrb[0].mxu0
  %v369 = vadd.f32 %v88, %v368
  %v370 = vpop.f32.mrb[0].mxu0
  %371 = vmatprep.mubr.f32.mxu0 0.0
  %372 = vmatmul.mubr.f32.gmra.mrb[0].mxu0 %v104
  %v373 = vpop.f32.mrb[0].mxu0
  %v374 = vadd.f32 %v88, %v373
  %v375 = vpop.f32.mrb[0].mxu0
  %376 = vmatprep.mubr.f32.mxu0 0.0
  %377 = vmatmul.mubr.f32.gmra.mrb[0].mxu0 %v107
  %v378 = vpop.f32.mrb[0].mxu0
  %v379 = vadd.f32 %v88, %v378
  %v380 = vpop.f32.mrb[0].mxu0
  %381 = vmatprep.mubr.f32.mxu0 0.0
  %382 = vmatmul.mubr.f32.gmra.mrb[0].mxu0 %v110
  %v383 = vpop.f32.mrb[0].mxu0
  %v384 = vadd.f32 %v88, %v383
  %v385 = vpop.f32.mrb[0].mxu0
  %386 = vmatprep.mubr.f32.mxu0 0.0
  %387 = vmatmul.mubr.f32.gmra.mrb[0].mxu0 %v113
  %v388 = vpop.f32.mrb[0].mxu0
  %v389 = vadd.f32 %v88, %v388
  %v390 = vpop.f32.mrb[0].mxu0
  %391 = vmatprep.mubr.f32.mxu0 0.0
  %392 = vmatmul.mubr.f32.gmra.mrb[0].mxu0 %v116
  %v393 = vpop.f32.mrb[0].mxu0
  %v394 = vadd.f32 %v88, %v393
  %v395 = vpop.f32.mrb[0].mxu0
  %396 = vmatprep.mubr.f32.mxu0 0.0
  %397 = vmatmul.mubr.f32.gmra.mrb[0].mxu0 %v119
  %v398 = vpop.f32.mrb[0].mxu0
  %v399 = vadd.f32 %v88, %v398
  %v400 = vpop.f32.mrb[0].mxu0
  %401 = vmatprep.mubr.f32.mxu0 0.0
  %402 = vmatmul.mubr.f32.gmra.mrb[0].mxu0 %v122
  %v403 = vpop.f32.mrb[0].mxu0
  %v404 = vadd.f32 %v88, %v403
  %v405 = vpop.f32.mrb[0].mxu0
  %406 = vmatprep.mubr.f32.mxu0 0.0
  %407 = vmatmul.mubr.f32.gmra.mrb[0].mxu0 %v125
  %v408 = vpop.f32.mrb[0].mxu0
  %v409 = vadd.f32 %v88, %v408
  %v410 = vpop.f32.mrb[0].mxu0
  %411 = vmatprep.mubr.f32.mxu0 0.0
  %412 = vmatmul.mubr.f32.gmra.mrb[0].mxu0 %v128
  %v413 = vpop.f32.mrb[0].mxu0
  %v414 = vadd.f32 %v88, %v413
  %v415 = vpop.f32.mrb[0].mxu0
  %416 = vmatprep.mubr.f32.mxu0 0.0
  %417 = vmatmul.mubr.f32.gmra.mrb[0].mxu0 %v131
  %v418 = vpop.f32.mrb[0].mxu0
  %v419 = vadd.f32 %v88, %v418
  %v420 = vpop.f32.mrb[0].mxu0
  %421 = vmatprep.mubr.f32.mxu0 0.0
  %422 = vmatmul.mubr.f32.gmra.mrb[0].mxu0 %v134
  %v423 = vpop.f32.mrb[0].mxu0
  %v424 = vadd.f32 %v88, %v423
  %v425 = vpop.f32.mrb[0].mxu0
  %426 = vmatprep.mubr.f32.mxu0 0.0
  %427 = vmatmul.mubr.f32.gmra.mrb[0].mxu0 %v137
  %v428 = vpop.f32.mrb[0].mxu0
  %v429 = vadd.f32 %v88, %v428
  %v430 = vpop.f32.mrb[0].mxu0
  %431 = vmatprep.mubr.f32.mxu0 0.0
  %432 = vmatmul.mubr.f32.gmra.mrb[0].mxu0 %v140
  %v433 = vpop.f32.mrb[0].mxu0
  %v434 = vadd.f32 %v88, %v433
  %v435 = vpop.f32.mrb[0].mxu0
  %436 = vmatprep.mubr.f32.mxu0 0.0
  %437 = vmatmul.mubr.f32.gmra.mrb[0].mxu0 %v143
  %v438 = vpop.f32.mrb[0].mxu0
  %v439 = vadd.f32 %v88, %v438
  %v440 = vpop.f32.mrb[0].mxu0
  %441 = vmatprep.mubr.f32.mxu0 0.0
  %442 = vmatmul.mubr.f32.gmra.mrb[0].mxu0 %v146
  %v443 = vpop.f32.mrb[0].mxu0
  %v444 = vadd.f32 %v88, %v443
  %v445 = vpop.f32.mrb[0].mxu0
  %446 = vmatprep.mubr.f32.mxu0 0.0
  %447 = vmatmul.mubr.f32.gmra.mrb[0].mxu0 %v149
  %v448 = vpop.f32.mrb[0].mxu0
  %v449 = vadd.f32 %v88, %v448
  %v450 = vpop.f32.mrb[0].mxu0
  %451 = vmatprep.mubr.f32.mxu0 0.0
  %452 = vmatmul.mubr.f32.gmra.mrb[0].mxu0 %v152
  %v453 = vpop.f32.mrb[0].mxu0
  %v454 = vadd.f32 %v88, %v453
  %v455 = vpop.f32.mrb[0].mxu0
  %456 = vmatprep.mubr.f32.mxu0 0.0
  %457 = vmatmul.mubr.f32.gmra.mrb[0].mxu0 %v155
  %v458 = vpop.f32.mrb[0].mxu0
  %v459 = vadd.f32 %v88, %v458
  %v460 = vpop.f32.mrb[0].mxu0
  %461 = vmatprep.mubr.f32.mxu0 0.0
  %462 = vmatmul.mubr.f32.gmra.mrb[0].mxu0 %v158
  %v463 = vpop.f32.mrb[0].mxu0
  %v464 = vadd.f32 %v88, %v463
  %v465 = vpop.f32.mrb[0].mxu0
  %466 = vmatprep.mubr.f32.mxu0 0.0
  %467 = vmatmul.mubr.f32.gmra.mrb[0].mxu0 %v161
  %v468 = vpop.f32.mrb[0].mxu0
  %v469 = vadd.f32 %v88, %v468
  %v470 = vpop.f32.mrb[0].mxu0
  %471 = vmatprep.mubr.f32.mxu0 0.0
  %472 = vmatmul.mubr.f32.gmra.mrb[0].mxu0 %v164
  %v473 = vpop.f32.mrb[0].mxu0
  %v474 = vadd.f32 %v88, %v473
  %v475 = vpop.f32.mrb[0].mxu0
  %476 = vmatprep.mubr.f32.mxu0 0.0
  %477 = vmatmul.mubr.f32.gmra.mrb[0].mxu0 %v167
  %v478 = vpop.f32.mrb[0].mxu0
  %v479 = vadd.f32 %v88, %v478
  %v480 = vpop.f32.mrb[0].mxu0
  %481 = vmatprep.mubr.f32.mxu0 0.0
  %482 = vmatmul.mubr.f32.gmra.mrb[0].mxu0 %v170
  %v483 = vpop.f32.mrb[0].mxu0
  %v484 = vadd.f32 %v88, %v483
  %v485 = vpop.f32.mrb[0].mxu0
  %486 = vmatprep.mubr.f32.mxu0 0.0
  %487 = vmatmul.mubr.f32.gmra.mrb[0].mxu0 %v173
  %v488 = vpop.f32.mrb[0].mxu0
  %v489 = vadd.f32 %v88, %v488
  %v490 = vpop.f32.mrb[0].mxu0
  %491 = vmatprep.mubr.f32.mxu0 0.0
  %492 = vmatmul.mubr.f32.gmra.mrb[0].mxu0 %v176
  %v493 = vpop.f32.mrb[0].mxu0
  %v494 = vadd.f32 %v88, %v493
  %v495 = vpop.f32.mrb[0].mxu0
  %496 = vmatprep.mubr.f32.mxu0 0.0
  %497 = vmatmul.mubr.f32.gmra.mrb[0].mxu0 %v179
  %v498 = vpop.f32.mrb[0].mxu0
  %v499 = vadd.f32 %v88, %v498
  %v500 = vpop.f32.mrb[0].mxu0
  %501 = vmatprep.mubr.f32.mxu0 0.0
  %502 = vmatmul.mubr.f32.gmra.mrb[0].mxu0 %v182
  %v503 = vpop.f32.mrb[0].mxu0
  %v504 = vadd.f32 %v88, %v503
  %v505 = vpop.f32.mrb[0].mxu0
  %506 = vmatprep.mubr.f32.mxu0 0.0
  %507 = vmatmul.mubr.f32.gmra.mrb[0].mxu0 %v185
  %v508 = vpop.f32.mrb[0].mxu0
  %v509 = vadd.f32 %v88, %v508
  %v510 = vpop.f32.mrb[0].mxu0
  %511 = vmatprep.mubr.f32.mxu0 0.0
  %512 = vmatmul.mubr.f32.gmra.mrb[0].mxu0 %v188
  %v513 = vpop.f32.mrb[0].mxu0
  %v514 = vadd.f32 %v88, %v513
  %v515 = vpop.f32.mrb[0].mxu0
  %516 = vmatprep.mubr.f32.mxu0 0.0
  %517 = vmatmul.mubr.f32.gmra.mrb[0].mxu0 %v191
  %v518 = vpop.f32.mrb[0].mxu0
  %v519 = vadd.f32 %v88, %v518
  %v520 = vpop.f32.mrb[0].mxu0
  %521 = vmatprep.mubr.f32.mxu0 0.0
  %522 = vmatmul.mubr.f32.gmra.mrb[0].mxu0 %v194
  %v523 = vpop.f32.mrb[0].mxu0
  %v524 = vadd.f32 %v88, %v523
  %v525 = vpop.f32.mrb[0].mxu0
  %526 = vmatprep.mubr.f32.mxu0 0.0
  %527 = vmatmul.mubr.f32.gmra.mrb[0].mxu0 %v197
  %v528 = vpop.f32.mrb[0].mxu0
  %v529 = vadd.f32 %v88, %v528
  %v530 = vpop.f32.mrb[0].mxu0
  %531 = vmatprep.mubr.f32.mxu0 0.0
  %532 = vmatmul.mubr.f32.gmra.mrb[0].mxu0 %v200
  %v533 = vpop.f32.mrb[0].mxu0
  %v534 = vadd.f32 %v88, %v533
  %v535 = vpop.f32.mrb[0].mxu0
  %536 = vmatprep.mubr.f32.mxu0 0.0
  %537 = vmatmul.mubr.f32.gmra.mrb[0].mxu0 %v203
  %v538 = vpop.f32.mrb[0].mxu0
  %v539 = vadd.f32 %v88, %v538
  %v540 = vpop.f32.mrb[0].mxu0
  %541 = vmatprep.mubr.f32.mxu0 0.0
  %542 = vmatmul.mubr.f32.gmra.mrb[0].mxu0 %v206
  %v543 = vpop.f32.mrb[0].mxu0
  %v544 = vadd.f32 %v88, %v543
  %v545 = vpop.f32.mrb[0].mxu0
  %546 = vmatprep.mubr.f32.mxu0 0.0
  %547 = vmatmul.mubr.f32.gmra.mrb[0].mxu0 %v209
  %v548 = vpop.f32.mrb[0].mxu0
  %v549 = vadd.f32 %v88, %v548
  %v550 = vpop.f32.mrb[0].mxu0
  %551 = vmatprep.mubr.f32.mxu0 0.0
  %552 = vmatmul.mubr.f32.gmra.mrb[0].mxu0 %v212
  %v553 = vpop.f32.mrb[0].mxu0
  %v554 = vadd.f32 %v88, %v553
  %v555 = vpop.f32.mrb[0].mxu0
  %556 = vmatprep.mubr.f32.mxu0 0.0
  %557 = vmatmul.mubr.f32.gmra.mrb[0].mxu0 %v215
  %v558 = vpop.f32.mrb[0].mxu0
  %v559 = vadd.f32 %v88, %v558
  %v560 = vpop.f32.mrb[0].mxu0
  %561 = vmatprep.mubr.f32.mxu0 0.0
  %562 = vmatmul.mubr.f32.gmra.mrb[0].mxu0 %v218
  %v563 = vpop.f32.mrb[0].mxu0
  %v564 = vadd.f32 %v88, %v563
  %v565 = vpop.f32.mrb[0].mxu0
  %566 = vmatprep.mubr.f32.mxu0 0.0
  %567 = vmatmul.mubr.f32.gmra.mrb[0].mxu0 %v221
  %v568 = vpop.f32.mrb[0].mxu0
  %v569 = vadd.f32 %v88, %v568
  %v570 = vpop.f32.mrb[0].mxu0
  %571 = vmatprep.mubr.f32.mxu0 0.0
  %572 = vmatmul.mubr.f32.gmra.mrb[0].mxu0 %v224
  %v573 = vpop.f32.mrb[0].mxu0
  %v574 = vadd.f32 %v88, %v573
  %v575 = vpop.f32.mrb[0].mxu0
  %576 = vmatprep.mubr.f32.mxu0 0.0
  %577 = vmatmul.mubr.f32.gmra.mrb[0].mxu0 %v227
  %v578 = vpop.f32.mrb[0].mxu0
  %v579 = vadd.f32 %v88, %v578
  %v580 = vpop.f32.mrb[0].mxu0
  %581 = vmatprep.mubr.f32.mxu0 0.0
  %582 = vmatmul.mubr.f32.gmra.mrb[0].mxu0 %v230
  %v583 = vpop.f32.mrb[0].mxu0
  %v584 = vadd.f32 %v88, %v583
  %v585 = vpop.f32.mrb[0].mxu0
  %586 = vmatprep.mubr.f32.mxu0 0.0
  %587 = vmatmul.mubr.f32.gmra.mrb[0].mxu0 %v233
  %v588 = vpop.f32.mrb[0].mxu0
  %v589 = vadd.f32 %v88, %v588
  %v590 = vpop.f32.mrb[0].mxu0
  %591 = vmatprep.mubr.f32.mxu0 0.0
  %592 = vmatmul.mubr.f32.gmra.mrb[0].mxu0 %v236
  %v593 = vpop.f32.mrb[0].mxu0
  %v594 = vadd.f32 %v88, %v593
  %v595 = vpop.f32.mrb[0].mxu0
  %596 = vmatprep.mubr.f32.mxu0 0.0
  %597 = vmatmul.mubr.f32.gmra.mrb[0].mxu0 %v239
  %v598 = vpop.f32.mrb[0].mxu0
  %v599 = vadd.f32 %v88, %v598
  %v600 = vpop.f32.mrb[0].mxu0
  %601 = vmatprep.mubr.f32.mxu0 0.0
  %602 = vmatmul.mubr.f32.gmra.mrb[0].mxu0 %v242
  %v603 = vpop.f32.mrb[0].mxu0
  %v604 = vadd.f32 %v88, %v603
  %v605 = vpop.f32.mrb[0].mxu0
  %606 = vmatprep.mubr.f32.mxu0 0.0
  %607 = vmatmul.mubr.f32.gmra.mrb[0].mxu0 %v245
  %v608 = vpop.f32.mrb[0].mxu0
  %v609 = vadd.f32 %v88, %v608
  %v610 = vpop.f32.mrb[0].mxu0
  %611 = vmatprep.mubr.f32.mxu0 0.0
  %612 = vmatmul.mubr.f32.gmra.mrb[0].mxu0 %v248
  %v613 = vpop.f32.mrb[0].mxu0
  %v614 = vadd.f32 %v88, %v613
  %v615 = vpop.f32.mrb[0].mxu0
  %616 = vmatprep.mubr.f32.mxu0 0.0
  %617 = vmatmul.mubr.f32.gmra.mrb[0].mxu0 %v251
  %v618 = vpop.f32.mrb[0].mxu0
  %v619 = vadd.f32 %v88, %v618
  %v620 = vpop.f32.mrb[0].mxu0
  %621 = vmatprep.mubr.f32.mxu0 0.0
  %622 = vmatmul.mubr.f32.gmra.mrb[0].mxu0 %v254
  %v623 = vpop.f32.mrb[0].mxu0
  %v624 = vadd.f32 %v88, %v623
  %v625 = vpop.f32.mrb[0].mxu0
  %626 = vmatprep.mubr.f32.mxu0 0.0
  %627 = vmatmul.mubr.f32.gmra.mrb[0].mxu0 %v257
  %v628 = vpop.f32.mrb[0].mxu0
  %v629 = vadd.f32 %v88, %v628
  %v630 = vpop.f32.mrb[0].mxu0
  %631 = vmatprep.mubr.f32.mxu0 0.0
  %632 = vmatmul.mubr.f32.gmra.mrb[0].mxu0 %v260
  %v633 = vpop.f32.mrb[0].mxu0
  %v634 = vadd.f32 %v88, %v633
  %v635 = vpop.f32.mrb[0].mxu0
  %636 = vmatprep.mubr.f32.mxu0 0.0
  %637 = vmatmul.mubr.f32.gmra.mrb[0].mxu0 %v263
  %v638 = vpop.f32.mrb[0].mxu0
  %v639 = vadd.f32 %v88, %v638
  %v640 = vpop.f32.mrb[0].mxu0
  %641 = vmatprep.mubr.f32.mxu0 0.0
  %642 = vmatmul.mubr.f32.gmra.mrb[0].mxu0 %v266
  %v643 = vpop.f32.mrb[0].mxu0
  %v644 = vadd.f32 %v88, %v643
  %v645 = vpop.f32.mrb[0].mxu0
  %646 = vmatprep.mubr.f32.mxu0 0.0
  %647 = vmatmul.mubr.f32.gmra.mrb[0].mxu0 %v269
  %v648 = vpop.f32.mrb[0].mxu0
  %v649 = vadd.f32 %v88, %v648
  %v650 = vpop.f32.mrb[0].mxu0
  %651 = vmatprep.mubr.f32.mxu0 0.0
  %652 = vmatmul.mubr.f32.gmra.mrb[0].mxu0 %v272
  %v653 = vpop.f32.mrb[0].mxu0
  %v654 = vadd.f32 %v88, %v653
  %v655 = vpop.f32.mrb[0].mxu0
  %656 = vmatprep.mubr.f32.mxu0 0.0
  %657 = vmatmul.mubr.f32.gmra.mrb[0].mxu0 %v275
  %v658 = vpop.f32.mrb[0].mxu0
  %v659 = vadd.f32 %v88, %v658
  %v660 = vpop.f32.mrb[0].mxu0
  %661 = vmatprep.mubr.f32.mxu0 0.0
  %662 = vmatmul.mubr.f32.gmra.mrb[0].mxu0 %v278
  %v663 = vpop.f32.mrb[0].mxu0
  %v664 = vadd.f32 %v88, %v663
  %v665 = vpop.f32.mrb[0].mxu0
  %666 = vmatprep.mubr.f32.mxu0 0.0
  %667 = vmatmul.mubr.f32.gmra.mrb[0].mxu0 %v281
  %v668 = vpop.f32.mrb[0].mxu0
  %v669 = vadd.f32 %v88, %v668
  %v670 = vpop.f32.mrb[0].mxu0
  %671 = vdwg.mxu0
  %v672 = vmax.f32 %v354, 0.0
  %v673 = vmax.f32 %v359, 0.0
  %v674 = vmax.f32 %v364, 0.0
  %v675 = vmax.f32 %v369, 0.0
  %v676 = vmax.f32 %v374, 0.0
  %v677 = vmax.f32 %v379, 0.0
  %v678 = vmax.f32 %v384, 0.0
  %v679 = vmax.f32 %v389, 0.0
  %v680 = vmax.f32 %v394, 0.0
  %v681 = vmax.f32 %v399, 0.0
  %v682 = vmax.f32 %v404, 0.0
  %v683 = vmax.f32 %v409, 0.0
  %v684 = vmax.f32 %v414, 0.0
  %v685 = vmax.f32 %v419, 0.0
  %v686 = vmax.f32 %v424, 0.0
  %v687 = vmax.f32 %v429, 0.0
  %v688 = vmax.f32 %v434, 0.0
  %v689 = vmax.f32 %v439, 0.0
  %v690 = vmax.f32 %v444, 0.0
  %v691 = vmax.f32 %v449, 0.0
  %v692 = vmax.f32 %v454, 0.0
  %v693 = vmax.f32 %v459, 0.0
  %v694 = vmax.f32 %v464, 0.0
  %v695 = vmax.f32 %v469, 0.0
  %v696 = vmax.f32 %v474, 0.0
  %v697 = vmax.f32 %v479, 0.0
  %v698 = vmax.f32 %v484, 0.0
  %v699 = vmax.f32 %v489, 0.0
  %v700 = vmax.f32 %v494, 0.0
  %v701 = vmax.f32 %v499, 0.0
  %v702 = vmax.f32 %v504, 0.0
  %v703 = vmax.f32 %v509, 0.0
  %v704 = vmax.f32 %v514, 0.0
  %v705 = vmax.f32 %v519, 0.0
  %v706 = vmax.f32 %v524, 0.0
  %v707 = vmax.f32 %v529, 0.0
  %v708 = vmax.f32 %v534, 0.0
  %v709 = vmax.f32 %v539, 0.0
  %v710 = vmax.f32 %v544, 0.0
  %v711 = vmax.f32 %v549, 0.0
  %v712 = vmax.f32 %v554, 0.0
  %v713 = vmax.f32 %v559, 0.0
  %v714 = vmax.f32 %v564, 0.0
  %v715 = vmax.f32 %v569, 0.0
  %v716 = vmax.f32 %v574, 0.0
  %v717 = vmax.f32 %v579, 0.0
  %v718 = vmax.f32 %v584, 0.0
  %v719 = vmax.f32 %v589, 0.0
  %v720 = vmax.f32 %v594, 0.0
  %v721 = vmax.f32 %v599, 0.0
  %v722 = vmax.f32 %v604, 0.0
  %v723 = vmax.f32 %v609, 0.0
  %v724 = vmax.f32 %v614, 0.0
  %v725 = vmax.f32 %v619, 0.0
  %v726 = vmax.f32 %v624, 0.0
  %v727 = vmax.f32 %v629, 0.0
  %v728 = vmax.f32 %v634, 0.0
  %v729 = vmax.f32 %v639, 0.0
  %v730 = vmax.f32 %v644, 0.0
  %v731 = vmax.f32 %v649, 0.0
  %v732 = vmax.f32 %v654, 0.0
  %v733 = vmax.f32 %v659, 0.0
  %v734 = vmax.f32 %v664, 0.0
  %v735 = vmax.f32 %v669, 0.0
  %vm736 = vcmask 64512
  %737 = vst.msk [vmem:[%s3] sm:$0xff] %vm736, %v672
  %738 = vst.msk [vmem:[%s3 + $0x8] sm:$0xff] %vm736, %v673
  %739 = vst.msk [vmem:[%s3 + $0x10] sm:$0xff] %vm736, %v674
  %740 = vst.msk [vmem:[%s3 + $0x18] sm:$0xff] %vm736, %v675
  %741 = vst.msk [vmem:[%s3 + $0x20] sm:$0xff] %vm736, %v676
  %742 = vst.msk [vmem:[%s3 + $0x28] sm:$0xff] %vm736, %v677
  %743 = vst.msk [vmem:[%s3 + $0x30] sm:$0xff] %vm736, %v678
  %744 = vst.msk [vmem:[%s3 + $0x38] sm:$0xff] %vm736, %v679
  %745 = vst.msk [vmem:[%s3 + $0x40] sm:$0xff] %vm736, %v680
  %746 = vst.msk [vmem:[%s3 + $0x48] sm:$0xff] %vm736, %v681
  %747 = vst.msk [vmem:[%s3 + $0x50] sm:$0xff] %vm736, %v682
  %748 = vst.msk [vmem:[%s3 + $0x58] sm:$0xff] %vm736, %v683
  %749 = vst.msk [vmem:[%s3 + $0x60] sm:$0xff] %vm736, %v684
  %750 = vst.msk [vmem:[%s3 + $0x68] sm:$0xff] %vm736, %v685
  %751 = vst.msk [vmem:[%s3 + $0x70] sm:$0xff] %vm736, %v686
  %752 = vst.msk [vmem:[%s3 + $0x78] sm:$0xff] %vm736, %v687
  %753 = vst.msk [vmem:[%s3 + $0x80] sm:$0xff] %vm736, %v688
  %754 = vst.msk [vmem:[%s3 + $0x88] sm:$0xff] %vm736, %v689
  %755 = vst.msk [vmem:[%s3 + $0x90] sm:$0xff] %vm736, %v690
  %756 = vst.msk [vmem:[%s3 + $0x98] sm:$0xff] %vm736, %v691
  %757 = vst.msk [vmem:[%s3 + $0xa0] sm:$0xff] %vm736, %v692
  %758 = vst.msk [vmem:[%s3 + $0xa8] sm:$0xff] %vm736, %v693
  %759 = vst.msk [vmem:[%s3 + $0xb0] sm:$0xff] %vm736, %v694
  %760 = vst.msk [vmem:[%s3 + $0xb8] sm:$0xff] %vm736, %v695
  %761 = vst.msk [vmem:[%s3 + $0xc0] sm:$0xff] %vm736, %v696
  %762 = vst.msk [vmem:[%s3 + $0xc8] sm:$0xff] %vm736, %v697
  %763 = vst.msk [vmem:[%s3 + $0xd0] sm:$0xff] %vm736, %v698
  %764 = vst.msk [vmem:[%s3 + $0xd8] sm:$0xff] %vm736, %v699
  %765 = vst.msk [vmem:[%s3 + $0xe0] sm:$0xff] %vm736, %v700
  %766 = vst.msk [vmem:[%s3 + $0xe8] sm:$0xff] %vm736, %v701
  %767 = vst.msk [vmem:[%s3 + $0xf0] sm:$0xff] %vm736, %v702
  %768 = vst.msk [vmem:[%s3 + $0xf8] sm:$0xff] %vm736, %v703
  %769 = vst.msk [vmem:[%s3 + $0x100] sm:$0xff] %vm736, %v704
  %770 = vst.msk [vmem:[%s3 + $0x108] sm:$0xff] %vm736, %v705
  %771 = vst.msk [vmem:[%s3 + $0x110] sm:$0xff] %vm736, %v706
  %772 = vst.msk [vmem:[%s3 + $0x118] sm:$0xff] %vm736, %v707
  %773 = vst.msk [vmem:[%s3 + $0x120] sm:$0xff] %vm736, %v708
  %774 = vst.msk [vmem:[%s3 + $0x128] sm:$0xff] %vm736, %v709
  %775 = vst.msk [vmem:[%s3 + $0x130] sm:$0xff] %vm736, %v710
  %776 = vst.msk [vmem:[%s3 + $0x138] sm:$0xff] %vm736, %v711
  %777 = vst.msk [vmem:[%s3 + $0x140] sm:$0xff] %vm736, %v712
  %778 = vst.msk [vmem:[%s3 + $0x148] sm:$0xff] %vm736, %v713
  %779 = vst.msk [vmem:[%s3 + $0x150] sm:$0xff] %vm736, %v714
  %780 = vst.msk [vmem:[%s3 + $0x158] sm:$0xff] %vm736, %v715
  %781 = vst.msk [vmem:[%s3 + $0x160] sm:$0xff] %vm736, %v716
  %782 = vst.msk [vmem:[%s3 + $0x168] sm:$0xff] %vm736, %v717
  %783 = vst.msk [vmem:[%s3 + $0x170] sm:$0xff] %vm736, %v718
  %784 = vst.msk [vmem:[%s3 + $0x178] sm:$0xff] %vm736, %v719
  %785 = vst.msk [vmem:[%s3 + $0x180] sm:$0xff] %vm736, %v720
  %786 = vst.msk [vmem:[%s3 + $0x188] sm:$0xff] %vm736, %v721
  %787 = vst.msk [vmem:[%s3 + $0x190] sm:$0xff] %vm736, %v722
  %788 = vst.msk [vmem:[%s3 + $0x198] sm:$0xff] %vm736, %v723
  %789 = vst.msk [vmem:[%s3 + $0x1a0] sm:$0xff] %vm736, %v724
  %790 = vst.msk [vmem:[%s3 + $0x1a8] sm:$0xff] %vm736, %v725
  %791 = vst.msk [vmem:[%s3 + $0x1b0] sm:$0xff] %vm736, %v726
  %792 = vst.msk [vmem:[%s3 + $0x1b8] sm:$0xff] %vm736, %v727
  %793 = vst.msk [vmem:[%s3 + $0x1c0] sm:$0xff] %vm736, %v728
  %794 = vst.msk [vmem:[%s3 + $0x1c8] sm:$0xff] %vm736, %v729
  %795 = vst.msk [vmem:[%s3 + $0x1d0] sm:$0xff] %vm736, %v730
  %796 = vst.msk [vmem:[%s3 + $0x1d8] sm:$0xff] %vm736, %v731
  %797 = vst.msk [vmem:[%s3 + $0x1e0] sm:$0xff] %vm736, %v732
  %798 = vst.msk [vmem:[%s3 + $0x1e8] sm:$0xff] %vm736, %v733
  %799 = vst.msk [vmem:[%s3 + $0x1f0] sm:$0xff] %vm736, %v734
  %800 = vst.msk [vmem:[%s3 + $0x1f8] sm:$0xff] %vm736, %v735
  // Predicated region
  $region14: #{basic_conv2d.1} parent=0 // pred_check
    _
  $region15: #{basic_conv2d.1} parent=0 // pred_check_branch
    %802 = sbr.rel (0) target = $region17
  $region16: #{basic_conv2d.1} parent=0 // pred_region
    _
  $region17: #{basic_conv2d.1} parent=0 // pred_fallthru
    _
  // Predicated region
  $region18: #{basic_conv2d.1} parent=0 // pred_check
    _
  $region19: #{basic_conv2d.1} parent=0 // pred_check_branch
    %804 = sbr.rel (0) target = $region21
  $region20: #{basic_conv2d.1} parent=0 // pred_region
    _
  $region21: #{basic_conv2d.1} parent=0 // pred_fallthru
    _

</llo_original>
